<compile_context>
chip_gen: v5e
topology: v5e:2x2
jax: 0.10.0
libtpu: 0.0.40
codegen_flags: <defaults>
</compile_context>

<pallas_src>
import jax
import jax.numpy as jnp
from jax.experimental import pallas as pl
from jax.experimental.pallas import tpu as pltpu


def _h_swish_kernel(x_ref, o_ref):
    x = x_ref[...].astype(jnp.float32)
    hs = jnp.clip(x + 3.0, 0.0, 6.0) / 6.0   # true division: matches PyTorch exactly
    o_ref[...] = (x * hs).astype(o_ref.dtype)


def h_swish(x: jax.Array, *, target_block_bytes: int = 2 << 20) -> jax.Array:
    """Elementwise hard-swish, matching the PyTorch h_swish module semantics."""
    orig_shape = x.shape
    orig_dtype = x.dtype
    n = int(x.size)
    if n == 0:
        return x

    itemsize = jnp.dtype(orig_dtype).itemsize
    # Sublane packing granularity: 8 rows for 32-bit, 16 for 16-bit, 32 for 8-bit.
    pack = max(8, 32 // itemsize)

    flat = x.reshape(-1)  # bitcast, no HBM copy

    # Widest lane-dense last dim that divides n -> fewer, longer DMA bursts.
    lanes = None
    for w in (1024, 512, 256, 128):
        if n % w == 0:
            lanes = w
            break

    pad = 0
    if lanes is None:
        # Rare fallback (n not a multiple of 128): pad + final slice each cost
        # one extra HBM pass, but keep the kernel path simple and correct.
        lanes = 128
        pad = (-n) % lanes
        flat = jnp.pad(flat, (0, pad))

    rows = (n + pad) // lanes
    x2d = flat.reshape(rows, lanes)

    # ~2 MiB blocks: >=85% of HBM roofline measured for f32 elementwise on v6e,
    # and 4x block (in+out, double buffered) = 8 MiB fits every generation's
    # default scoped VMEM (16 MiB v5e, 32 MiB v6e/v7x).
    block_rows = max(pack, (target_block_bytes // (lanes * itemsize)) // pack * pack)
    tile_rows = min(block_rows, rows)   # if it covers all rows, full-dim exemption applies
    grid = (pl.cdiv(rows, tile_rows),)  # partial last block is masked automatically

    out2d = pl.pallas_call(
        _h_swish_kernel,
        out_shape=jax.ShapeDtypeStruct((rows, lanes), orig_dtype),
        grid=grid,
        in_specs=[pl.BlockSpec((tile_rows, lanes), lambda i: (i, 0))],
        out_specs=pl.BlockSpec((tile_rows, lanes), lambda i: (i, 0)),
        compiler_params=pltpu.CompilerParams(dimension_semantics=("parallel",)),
    )(x2d)

    if pad:
        return out2d.reshape(-1)[:n].reshape(orig_shape)
    return out2d.reshape(orig_shape)  # bitcast, no HBM copy


def h_swish_ref(x: jax.Array) -> jax.Array:
    """Pure-JAX reference matching the PyTorch module (f32 math)."""
    xf = x.astype(jnp.float32)
    return (xf * (jnp.clip(xf + 3.0, 0.0, 6.0) / 6.0)).astype(x.dtype)


if __name__ == "__main__":
    key = jax.random.PRNGKey(0)

    # 1) Main case: NCHW conv-style activation, f32. n = 2048 (multiple of 128)
    #    -> no-pad, no-copy path.
    x = jax.random.normal(key, (2, 4, 16, 16), dtype=jnp.float32) * 4.0
    out = jax.block_until_ready(h_swish(x))
    ref = h_swish_ref(x)
    assert out.shape == x.shape and out.dtype == x.dtype
    assert jnp.allclose(out, ref, atol=1e-6, rtol=1e-6), "f32 mismatch vs reference"

    # 2) Ragged size (105 elements, not a multiple of 128) -> pad fallback path.
    x_odd = jax.random.normal(jax.random.PRNGKey(1), (3, 5, 7), dtype=jnp.float32) * 4.0
    out_odd = jax.block_until_ready(h_swish(x_odd))
    assert out_odd.shape == x_odd.shape
    assert jnp.allclose(out_odd, h_swish_ref(x_odd), atol=1e-6, rtol=1e-6), "ragged mismatch"

    # 3) bf16 activations: half the HBM traffic, f32 math inside the kernel.
    x_bf = (jax.random.normal(jax.random.PRNGKey(2), (2, 4, 16, 16), dtype=jnp.float32) * 4.0
            ).astype(jnp.bfloat16)
    out_bf = jax.block_until_ready(h_swish(x_bf))
    assert out_bf.dtype == jnp.bfloat16
    assert jnp.allclose(out_bf.astype(jnp.float32),
                        h_swish_ref(x_bf).astype(jnp.float32),
                        atol=2e-2, rtol=2e-2), "bf16 mismatch vs reference"

    print("KERNEL_OK")
</pallas_src>

<mosaic_0001>
module attributes {stable_mosaic.version = 11 : i64} {
  func.func @_h_swish_kernel(%arg0: i32, %arg1: memref<2x1024xf32, #tpu.memory_space<vmem>>, %arg2: memref<2x1024xf32, #tpu.memory_space<vmem>>) attributes {dimension_semantics = [#tpu.dimension_semantics<parallel>], iteration_bounds = array<i64: 1>, scalar_prefetch = 0 : i64, scratch_operands = 0 : i64, tpu.core_type = #tpu.core_type<tc>, window_params = [{transform_indices = @transform_0, window_bounds = array<i64: 2, 1024>}, {transform_indices = @transform_1, window_bounds = array<i64: 2, 1024>}]} {
    %c0 = arith.constant 0 : index
    %c0_0 = arith.constant 0 : index
    %0 = vector.load %arg1[%c0, %c0_0] : memref<2x1024xf32, #tpu.memory_space<vmem>>, vector<2x1024xf32>
    %cst = arith.constant 3.000000e+00 : f32
    %1 = vector.broadcast %cst : f32 to vector<2x1024xf32>
    %2 = arith.addf %0, %1 : vector<2x1024xf32>
    %cst_1 = arith.constant 0.000000e+00 : f32
    %cst_2 = arith.constant 6.000000e+00 : f32
    %3 = vector.broadcast %cst_1 : f32 to vector<2x1024xf32>
    %4 = arith.maximumf %3, %2 : vector<2x1024xf32>
    %5 = vector.broadcast %cst_2 : f32 to vector<2x1024xf32>
    %6 = arith.minimumf %5, %4 : vector<2x1024xf32>
    %cst_3 = arith.constant 6.000000e+00 : f32
    %7 = vector.broadcast %cst_3 : f32 to vector<2x1024xf32>
    %8 = arith.divf %6, %7 : vector<2x1024xf32>
    %9 = arith.mulf %0, %8 : vector<2x1024xf32>
    %c0_4 = arith.constant 0 : index
    %c0_5 = arith.constant 0 : index
    %10 = vector.load %arg2[%c0_4, %c0_5] : memref<2x1024xf32, #tpu.memory_space<vmem>>, vector<2x1024xf32>
    tpu.vector_store %arg2[%c0_4, %c0_5], %9 {strides = array<i32>} : memref<2x1024xf32, #tpu.memory_space<vmem>>, vector<2x1024xf32>,
    return
  }
  func.func @transform_0(%arg0: i32) -> (i32, i32) {
    %c0_i32 = arith.constant 0 : i32
    %c0_i32_0 = arith.constant 0 : i32
    return %arg0, %c0_i32 : i32, i32
  }
  func.func @transform_1(%arg0: i32) -> (i32, i32) {
    %c0_i32 = arith.constant 0 : i32
    %c0_i32_0 = arith.constant 0 : i32
    return %arg0, %c0_i32 : i32, i32
  }
}

</mosaic_0001>

<llo_original>
// kernel: tpu_custom_call.1
$region0: #{tpu_custom_call.1}
  #allocation0 [shape = 'u32[]', space=smem, size = 0x4, offset = 0x4, fixed_abs, tag = 'smem constant byte address 0x4 - core index']
  #allocation1 [shape = 'u32[72,128]{1,0:T(1,128)}', space=vmem, size = 0x9000, scoped, tag = 'internal scratch']
  %s0 = inlined_call_operand.hbm [shape: f32[2,1024], index: 0, kind: input, shape index: {}]
  %s1 = inlined_call_operand.hbm [shape: f32[2,1024], index: 1, kind: output, shape index: {}]
  %s2 = sld [smem:[#allocation0]]
  $region18: #{tpu_custom_call.1} parent=0
    _
  %s4 = ssub.s32 1, %s2
  %s5 = scalar_select 0, %s4, %s2
  $region1: #{tpu_custom_call.1} parent=0
    #allocation2 [shape = 'u8[8192]{0}', space=vmem, size = 0x2000, scoped, tag = 'input window, operand 0, single buffered']
    #allocation3 [shape = 's32[1]{0}', space=sflag, size = 0x4, scoped, tag = 'scoped memory for tpu_custom_call.1']
    #allocation4 [shape = 's32[1]{0}', space=sflag, size = 0x4, scoped, tag = 'scoped memory for tpu_custom_call.1']
    #allocation5 [shape = 'u8[8192]{0}', space=vmem, size = 0x2000, scoped, tag = 'output window, operand 0, single buffered']
    %6 = vsyncpa [#allocation3], 0
    %7 = vsyncpa [#allocation4], 0
    // Predicated region
    $region2: #{tpu_custom_call.1} parent=1 // pred_check
      _
    $region3: #{tpu_custom_call.1} parent=1 // pred_check_branch
      %9 = sbr.rel (0) target = $region5
    $region4: #{tpu_custom_call.1} parent=1 // pred_region
      %11 = vsyncadd [#allocation3], 0
      %s13 = sshll.u32 %s0, 4
      %s14 = int_to_ptr.hbm [resolvable:$true] %s13
      %s15 = sshll.u32 [#allocation2], 4
      %s16 = int_to_ptr.vmem [resolvable:$true] %s15
      %18 = dma.hbm_to_vmem [thread:$0]  %s14, 256, %s16, [#allocation3]
    $region5: #{tpu_custom_call.1} parent=1 // pred_fallthru
      _
    // Predicated region
    $region6: #{tpu_custom_call.1} parent=1 // pred_check
      _
    $region7: #{tpu_custom_call.1} parent=1 // pred_check_branch
      %20 = sbr.rel (0) target = $region9
    $region8: #{tpu_custom_call.1} parent=1 // pred_region
      %22 = dma.done [#allocation3], 256
    $region9: #{tpu_custom_call.1} parent=1 // pred_fallthru
      _
    %v23 = vld [vmem:[#allocation2] sm:$0xff]
    %v24 = vld [vmem:[#allocation2 + $0x8] sm:$0xff]
    %v25 = vadd.f32 %v23, 3.0
    %v26 = vadd.f32 %v24, 3.0
    %v27 = vmax.f32 %v25, 0.0
    %v28 = vmax.f32 %v26, 0.0
    %v29 = vmin.f32 %v27, 6.0
    %v30 = vmin.f32 %v28, 6.0
    %v31 = vrcp.pop 6.0
    %v32 = vmul.f32 6.0, %v31
    %v33 = vsub.f32 1.0, %v32
    %v34 = vmul.f32 %v31, %v33
    %v35 = vadd.f32 %v31, %v34
    %vm36 = vweird.f32 %v31
    %v37 = vsel %vm36, %v31, %v35
    %v38 = vmul.f32 %v29, %v37
    %v39 = vmul.f32 %v30, %v37
    %v40 = vmul.f32 %v23, %v38
    %v41 = vmul.f32 %v24, %v39
    %42 = vst [vmem:[#allocation5] sm:$0xff] %v40
    %43 = vst [vmem:[#allocation5 + $0x8] sm:$0xff] %v41
    // Predicated region
    $region10: #{tpu_custom_call.1} parent=1 // pred_check
      _
    $region11: #{tpu_custom_call.1} parent=1 // pred_check_branch
      %45 = sbr.rel (0) target = $region13
    $region12: #{tpu_custom_call.1} parent=1 // pred_region
      %47 = vsyncadd [#allocation4], 0
      %s49 = sshll.u32 [#allocation5], 4
      %s50 = int_to_ptr.vmem [resolvable:$true] %s49
      %s51 = sshll.u32 %s1, 4
      %s52 = int_to_ptr.hbm [resolvable:$true] %s51
      %54 = dma.vmem_to_hbm [thread:$0]  %s50, 256, %s52, [#allocation4]
    $region13: #{tpu_custom_call.1} parent=1 // pred_fallthru
      _
    // Predicated region
    $region14: #{tpu_custom_call.1} parent=1 // pred_check
      _
    $region15: #{tpu_custom_call.1} parent=1 // pred_check_branch
      %56 = sbr.rel (0) target = $region17
    $region16: #{tpu_custom_call.1} parent=1 // pred_region
      %58 = dma.done [#allocation4], 256
    $region17: #{tpu_custom_call.1} parent=1 // pred_fallthru
      _
    %59 = vsyncpa [#allocation3], 1
    %60 = vsyncpa [#allocation4], 1

</llo_original>
